<compile_context>
chip_gen: v5e
topology: v5e:2x2
jax: 0.10.0
libtpu: 0.0.40
codegen_flags: <defaults>
</compile_context>

<pallas_src>
import jax
import jax.numpy as jnp
from jax.experimental import pallas as pl
from jax.experimental.pallas import tpu as pltpu

_LANE = 128


def _round_up(n, m):
    return ((n + m - 1) // m) * m


def _mlp_kernel(x_ref, w1_ref, b1_ref, w2_ref, b2_ref, out_ref):
    # TODO(synk): Dropout is identity in eval/prediction mode; training-mode
    # stochastic dropout (pltpu.prng_random_bits masking) is not implemented.
    x = x_ref[...]                                             # bf16 (TB, IN)

    # Linear 1 (+ bias) + ReLU: bf16 MXU inputs, f32 accumulation.
    h = jnp.dot(x, w1_ref[...], preferred_element_type=jnp.float32)
    h = jnp.maximum(h + b1_ref[...], 0.0)                      # (TB, H_pad) f32

    # Linear 2 (+ bias): cast activations to bf16 for the MXU fast path.
    o = jnp.dot(h.astype(w2_ref.dtype), w2_ref[...],
                preferred_element_type=jnp.float32)
    out_ref[...] = (o + b2_ref[...]).astype(out_ref.dtype)     # (TB, C_pad)


def neural_net_forward(x, w1, b1, w2, b2, *, block_batch=512):
    """Eval-mode NeuralNet forward.

    x: (B, input_size); w1: (input_size, hidden); b1: (1, hidden);
    w2: (hidden, num_classes); b2: (1, num_classes). Returns (B, num_classes) f32.
    """
    B, IN = x.shape
    HID = w1.shape[1]
    CLS = w2.shape[1]

    # Lane-dense padding of hidden / class dims. Padded weight & bias columns are
    # exactly zero, so padded hidden units stay 0 after ReLU and padded logits are
    # zero; they are sliced away before returning.
    H_pad = _round_up(HID, _LANE)
    C_pad = _round_up(CLS, _LANE)

    # Batch tile: multiple of 16 (bf16 sublane packing); cap so tiny inputs don't
    # over-pad, while large batches stream through ~512-row pipelined tiles.
    TB = min(block_batch, _round_up(B, 16))
    B_pad = _round_up(B, TB)

    # bf16 inputs/weights halve HBM traffic; accumulation stays f32 in-kernel.
    xp = jnp.zeros((B_pad, IN), jnp.bfloat16).at[:B, :].set(x.astype(jnp.bfloat16))
    w1p = jnp.zeros((IN, H_pad), jnp.bfloat16).at[:, :HID].set(w1.astype(jnp.bfloat16))
    b1p = jnp.zeros((1, H_pad), jnp.float32).at[:, :HID].set(b1.astype(jnp.float32))
    w2p = jnp.zeros((H_pad, C_pad), jnp.bfloat16).at[:HID, :CLS].set(w2.astype(jnp.bfloat16))
    b2p = jnp.zeros((1, C_pad), jnp.float32).at[:, :CLS].set(b2.astype(jnp.float32))

    out_padded = pl.pallas_call(
        _mlp_kernel,
        out_shape=jax.ShapeDtypeStruct((B_pad, C_pad), jnp.float32),
        grid_spec=pltpu.PrefetchScalarGridSpec(
            num_scalar_prefetch=0,
            grid=(B_pad // TB,),
            in_specs=[
                pl.BlockSpec((TB, IN), lambda i: (i, 0)),      # x tiles stream
                pl.BlockSpec((IN, H_pad), lambda i: (0, 0)),   # weights stay VMEM-resident
                pl.BlockSpec((1, H_pad), lambda i: (0, 0)),
                pl.BlockSpec((H_pad, C_pad), lambda i: (0, 0)),
                pl.BlockSpec((1, C_pad), lambda i: (0, 0)),
            ],
            out_specs=pl.BlockSpec((TB, C_pad), lambda i: (i, 0)),
        ),
        compiler_params=pltpu.CompilerParams(
            dimension_semantics=("parallel",),   # batch tiles are independent
        ),
    )(xp, w1p, b1p, w2p, b2p)

    return out_padded[:B, :CLS]


if __name__ == "__main__":
    # Small shapes consistent with the module: batch=8, input_size=64,
    # hidden_size=32, num_classes=10.
    B, IN, HID, CLS = 8, 64, 32, 10

    key = jax.random.PRNGKey(0)
    kx, kw1, kb1, kw2, kb2 = jax.random.split(key, 5)

    x = jax.random.normal(kx, (B, IN), dtype=jnp.float32)

    # Deterministic parameter init (PyTorch Linear-style uniform fan-in bound).
    bound1 = 1.0 / jnp.sqrt(IN)
    w1 = jax.random.uniform(kw1, (IN, HID), jnp.float32, -bound1, bound1)
    b1 = jax.random.uniform(kb1, (1, HID), jnp.float32, -bound1, bound1)

    bound2 = 1.0 / jnp.sqrt(HID)
    w2 = jax.random.uniform(kw2, (HID, CLS), jnp.float32, -bound2, bound2)
    b2 = jax.random.uniform(kb2, (1, CLS), jnp.float32, -bound2, bound2)

    out = neural_net_forward(x, w1, b1, w2, b2)
    jax.block_until_ready(out)

    # Pure-JAX reference with the same bf16 casts (eval-mode dropout == identity).
    xb = x.astype(jnp.bfloat16).astype(jnp.float32)
    w1b = w1.astype(jnp.bfloat16).astype(jnp.float32)
    w2b = w2.astype(jnp.bfloat16).astype(jnp.float32)
    h_ref = jnp.maximum(xb @ w1b + b1, 0.0).astype(jnp.bfloat16).astype(jnp.float32)
    ref = h_ref @ w2b + b2

    assert out.shape == (B, CLS)
    assert jnp.allclose(out, ref, atol=2e-2, rtol=2e-2), float(jnp.max(jnp.abs(out - ref)))

    print("KERNEL_OK")
</pallas_src>

<mosaic_0001>
module attributes {stable_mosaic.version = 11 : i64} {
  func.func @_mlp_kernel(%arg0: i32, %arg1: memref<16x64xbf16, #tpu.memory_space<vmem>>, %arg2: memref<64x128xbf16, #tpu.memory_space<vmem>>, %arg3: memref<1x128xf32, #tpu.memory_space<vmem>>, %arg4: memref<128x128xbf16, #tpu.memory_space<vmem>>, %arg5: memref<1x128xf32, #tpu.memory_space<vmem>>, %arg6: memref<16x128xf32, #tpu.memory_space<vmem>>) attributes {dimension_semantics = [#tpu.dimension_semantics<parallel>], iteration_bounds = array<i64: 1>, scalar_prefetch = 0 : i64, scratch_operands = 0 : i64, tpu.core_type = #tpu.core_type<tc>, window_params = [{transform_indices = @transform_0, window_bounds = array<i64: 16, 64>}, {pipeline_mode = #tpu.pipeline_mode<synchronous>, transform_indices = @transform_1, window_bounds = array<i64: 64, 128>}, {pipeline_mode = #tpu.pipeline_mode<synchronous>, transform_indices = @transform_2, window_bounds = array<i64: 1, 128>}, {pipeline_mode = #tpu.pipeline_mode<synchronous>, transform_indices = @transform_3, window_bounds = array<i64: 128, 128>}, {pipeline_mode = #tpu.pipeline_mode<synchronous>, transform_indices = @transform_4, window_bounds = array<i64: 1, 128>}, {transform_indices = @transform_5, window_bounds = array<i64: 16, 128>}]} {
    %c0 = arith.constant 0 : index
    %c0_0 = arith.constant 0 : index
    %0 = vector.load %arg1[%c0, %c0_0] : memref<16x64xbf16, #tpu.memory_space<vmem>>, vector<16x64xbf16>
    %c0_1 = arith.constant 0 : index
    %c0_2 = arith.constant 0 : index
    %1 = vector.load %arg2[%c0_1, %c0_2] : memref<64x128xbf16, #tpu.memory_space<vmem>>, vector<64x128xbf16>
    %cst = arith.constant dense<0.000000e+00> : vector<16x128xf32>
    %2 = tpu.matmul %0, %1, %cst {dimension_numbers = #tpu.dot_dimension_numbers<[1], [0], [0], [1], [0, 0, 1, 1], [], []>} : vector<16x64xbf16>, vector<64x128xbf16>, vector<16x128xf32> -> vector<16x128xf32>
    %c0_3 = arith.constant 0 : index
    %c0_4 = arith.constant 0 : index
    %3 = vector.load %arg3[%c0_3, %c0_4] : memref<1x128xf32, #tpu.memory_space<vmem>>, vector<1x128xf32>
    %4 = vector.broadcast %3 : vector<1x128xf32> to vector<16x128xf32>
    %5 = arith.addf %2, %4 : vector<16x128xf32>
    %cst_5 = arith.constant 0.000000e+00 : f32
    %6 = vector.broadcast %cst_5 : f32 to vector<16x128xf32>
    %7 = arith.maximumf %5, %6 : vector<16x128xf32>
    %8 = arith.truncf %7 : vector<16x128xf32> to vector<16x128xbf16>
    %c0_6 = arith.constant 0 : index
    %c0_7 = arith.constant 0 : index
    %9 = vector.load %arg4[%c0_6, %c0_7] : memref<128x128xbf16, #tpu.memory_space<vmem>>, vector<128x128xbf16>
    %cst_8 = arith.constant dense<0.000000e+00> : vector<16x128xf32>
    %10 = tpu.matmul %8, %9, %cst_8 {dimension_numbers = #tpu.dot_dimension_numbers<[1], [0], [0], [1], [0, 0, 1, 1], [], []>} : vector<16x128xbf16>, vector<128x128xbf16>, vector<16x128xf32> -> vector<16x128xf32>
    %c0_9 = arith.constant 0 : index
    %c0_10 = arith.constant 0 : index
    %11 = vector.load %arg5[%c0_9, %c0_10] : memref<1x128xf32, #tpu.memory_space<vmem>>, vector<1x128xf32>
    %12 = vector.broadcast %11 : vector<1x128xf32> to vector<16x128xf32>
    %13 = arith.addf %10, %12 : vector<16x128xf32>
    %c0_11 = arith.constant 0 : index
    %c0_12 = arith.constant 0 : index
    %14 = vector.load %arg6[%c0_11, %c0_12] : memref<16x128xf32, #tpu.memory_space<vmem>>, vector<16x128xf32>
    tpu.vector_store %arg6[%c0_11, %c0_12], %13 {strides = array<i32>} : memref<16x128xf32, #tpu.memory_space<vmem>>, vector<16x128xf32>,
    return
  }
  func.func @transform_0(%arg0: i32) -> (i32, i32) {
    %c0_i32 = arith.constant 0 : i32
    %c0_i32_0 = arith.constant 0 : i32
    return %arg0, %c0_i32 : i32, i32
  }
  func.func @transform_1(%arg0: i32) -> (i32, i32) {
    %c0_i32 = arith.constant 0 : i32
    %c0_i32_0 = arith.constant 0 : i32
    %c0_i32_1 = arith.constant 0 : i32
    return %c0_i32, %c0_i32_0 : i32, i32
  }
  func.func @transform_2(%arg0: i32) -> (i32, i32) {
    %c0_i32 = arith.constant 0 : i32
    %c0_i32_0 = arith.constant 0 : i32
    %c0_i32_1 = arith.constant 0 : i32
    return %c0_i32, %c0_i32_0 : i32, i32
  }
  func.func @transform_3(%arg0: i32) -> (i32, i32) {
    %c0_i32 = arith.constant 0 : i32
    %c0_i32_0 = arith.constant 0 : i32
    %c0_i32_1 = arith.constant 0 : i32
    return %c0_i32, %c0_i32_0 : i32, i32
  }
  func.func @transform_4(%arg0: i32) -> (i32, i32) {
    %c0_i32 = arith.constant 0 : i32
    %c0_i32_0 = arith.constant 0 : i32
    %c0_i32_1 = arith.constant 0 : i32
    return %c0_i32, %c0_i32_0 : i32, i32
  }
  func.func @transform_5(%arg0: i32) -> (i32, i32) {
    %c0_i32 = arith.constant 0 : i32
    %c0_i32_0 = arith.constant 0 : i32
    return %arg0, %c0_i32 : i32, i32
  }
}

</mosaic_0001>

<llo_original>
// kernel: tpu_custom_call.1
$region0: #{tpu_custom_call.1}
  #allocation0 [shape = 'u32[]', space=smem, size = 0x4, offset = 0x4, fixed_abs, tag = 'smem constant byte address 0x4 - core index']
  #allocation1 [shape = 'u32[72,128]{1,0:T(1,128)}', space=vmem, size = 0x9000, scoped, tag = 'internal scratch']
  %s0 = inlined_call_operand.hbm [shape: bf16[16,64], index: 0, kind: input, shape index: {}]
  %s1 = inlined_call_operand.hbm [shape: bf16[64,128], index: 1, kind: input, shape index: {}]
  %s2 = inlined_call_operand.vmem [shape: f32[1,128], index: 2, kind: input, shape index: {}]
  %s3 = inlined_call_operand.hbm [shape: bf16[128,128], index: 3, kind: input, shape index: {}]
  %s4 = inlined_call_operand.vmem [shape: f32[1,128], index: 4, kind: input, shape index: {}]
  %s5 = inlined_call_operand.hbm [shape: f32[16,128], index: 5, kind: output, shape index: {}]
  %s6 = sld [smem:[#allocation0]]
  $region42: #{tpu_custom_call.1} parent=0
    _
  %s8 = ssub.s32 1, %s6
  %s9 = scalar_select 0, %s8, %s6
  $region1: #{tpu_custom_call.1} parent=0
    #allocation2 [shape = 'u8[4096]{0}', space=vmem, size = 0x1000, scoped, tag = 'input window, operand 0, single buffered']
    #allocation3 [shape = 's32[1]{0}', space=sflag, size = 0x4, scoped, tag = 'scoped memory for tpu_custom_call.1']
    #allocation4 [shape = 's32[1]{0}', space=sflag, size = 0x4, scoped, tag = 'scoped memory for tpu_custom_call.1']
    #allocation5 [shape = 'u8[16384]{0}', space=vmem, size = 0x4000, scoped, tag = 'input window, operand 1, single buffered']
    #allocation6 [shape = 's32[1]{0}', space=sflag, size = 0x4, scoped, tag = 'scoped memory for tpu_custom_call.1']
    #allocation7 [shape = 'u8[32768]{0}', space=vmem, size = 0x8000, scoped, tag = 'input window, operand 3, single buffered']
    #allocation8 [shape = 'u8[8192]{0}', space=vmem, size = 0x2000, scoped, tag = 'output window, operand 0, single buffered']
    %10 = vsyncpa [#allocation3], 0
    %11 = vsyncpa [#allocation6], 0
    %12 = vsyncpa [#allocation4], 0
    // Predicated region
    $region2: #{tpu_custom_call.1} parent=1 // pred_check
      _
    $region3: #{tpu_custom_call.1} parent=1 // pred_check_branch
      %14 = sbr.rel (0) target = $region5
    $region4: #{tpu_custom_call.1} parent=1 // pred_region
      %16 = vsyncadd [#allocation3], 0
      %s17 = sshll.u32 %s0, 4
      %s18 = int_to_ptr.hbm [resolvable:$true] %s17
      %s19 = sshll.u32 [#allocation2], 4
      %s20 = int_to_ptr.vmem [resolvable:$true] %s19
      %25 = dma.hbm_to_vmem [thread:$0]  %s18, 128, %s20, [#allocation3], 64, 64, 4
    $region5: #{tpu_custom_call.1} parent=1 // pred_fallthru
      _
    // Predicated region
    $region6: #{tpu_custom_call.1} parent=1 // pred_check
      _
    $region7: #{tpu_custom_call.1} parent=1 // pred_check_branch
      %27 = sbr.rel (0) target = $region9
    $region8: #{tpu_custom_call.1} parent=1 // pred_region
      %29 = vsyncadd [#allocation6], 0
      %s30 = sshll.u32 %s1, 4
      %s31 = int_to_ptr.hbm [resolvable:$true] %s30
      %s32 = sshll.u32 [#allocation5], 4
      %s33 = int_to_ptr.vmem [resolvable:$true] %s32
      %38 = dma.hbm_to_vmem [thread:$0]  %s31, 512, %s33, [#allocation6], 64, 64, 4
    $region9: #{tpu_custom_call.1} parent=1 // pred_fallthru
      _
    // Predicated region
    $region10: #{tpu_custom_call.1} parent=1 // pred_check
      _
    $region11: #{tpu_custom_call.1} parent=1 // pred_check_branch
      %40 = sbr.rel (0) target = $region13
    $region12: #{tpu_custom_call.1} parent=1 // pred_region
      _
    $region13: #{tpu_custom_call.1} parent=1 // pred_fallthru
      _
    // Predicated region
    $region14: #{tpu_custom_call.1} parent=1 // pred_check
      _
    $region15: #{tpu_custom_call.1} parent=1 // pred_check_branch
      %42 = sbr.rel (0) target = $region17
    $region16: #{tpu_custom_call.1} parent=1 // pred_region
      %44 = vsyncadd [#allocation6], 0
      %s45 = sshll.u32 %s3, 4
      %s46 = int_to_ptr.hbm [resolvable:$true] %s45
      %s47 = sshll.u32 [#allocation7], 4
      %s48 = int_to_ptr.vmem [resolvable:$true] %s47
      %53 = dma.hbm_to_vmem [thread:$0]  %s46, 1024, %s48, [#allocation6], 64, 64, 4
    $region17: #{tpu_custom_call.1} parent=1 // pred_fallthru
      _
    // Predicated region
    $region18: #{tpu_custom_call.1} parent=1 // pred_check
      _
    $region19: #{tpu_custom_call.1} parent=1 // pred_check_branch
      %55 = sbr.rel (0) target = $region21
    $region20: #{tpu_custom_call.1} parent=1 // pred_region
      _
    $region21: #{tpu_custom_call.1} parent=1 // pred_fallthru
      _
    // Predicated region
    $region22: #{tpu_custom_call.1} parent=1 // pred_check
      _
    $region23: #{tpu_custom_call.1} parent=1 // pred_check_branch
      %57 = sbr.rel (0) target = $region25
    $region24: #{tpu_custom_call.1} parent=1 // pred_region
      %59 = dma.done [#allocation3], 128
    $region25: #{tpu_custom_call.1} parent=1 // pred_fallthru
      _
    // Predicated region
    $region26: #{tpu_custom_call.1} parent=1 // pred_check
      _
    $region27: #{tpu_custom_call.1} parent=1 // pred_check_branch
      %61 = sbr.rel (0) target = $region29
    $region28: #{tpu_custom_call.1} parent=1 // pred_region
      %63 = dma.done [#allocation6], 512
    $region29: #{tpu_custom_call.1} parent=1 // pred_fallthru
      _
    // Predicated region
    $region30: #{tpu_custom_call.1} parent=1 // pred_check
      _
    $region31: #{tpu_custom_call.1} parent=1 // pred_check_branch
      %65 = sbr.rel (0) target = $region33
    $region32: #{tpu_custom_call.1} parent=1 // pred_region
      %67 = dma.done [#allocation6], 1024
    $region33: #{tpu_custom_call.1} parent=1 // pred_fallthru
      _
    %v69 = vld [vmem:[#allocation2] sm:$0xf]
    %v70 = vld [vmem:[#allocation2 + $0x4] sm:$0xf]
    %v71 = vld [vmem:[#allocation5] sm:$0xf]
    %v72 = vld [vmem:[#allocation5 + $0x4] sm:$0xf]
    %v73 = vld [vmem:[#allocation5 + $0x8] sm:$0xf]
    %v74 = vld [vmem:[#allocation5 + $0xc] sm:$0xf]
    %v75 = vld [vmem:[#allocation5 + $0x10] sm:$0xf]
    %v76 = vld [vmem:[#allocation5 + $0x14] sm:$0xf]
    %v77 = vld [vmem:[#allocation5 + $0x18] sm:$0xf]
    %v78 = vld [vmem:[#allocation5 + $0x1c] sm:$0xf]
    %v79 = vld [vmem:[%s2] sm:$0x1]
    %v81 = vperm.slane %v79, 0
    %v85 = vunpack.c.l.b16 %v69
    %v86 = vunpack.c.l.b16 %v70
    %v87 = vpack.c.b16 %v86, %v85
    %v96 = vunpack.c.l.b16 %v71
    %v97 = vunpack.c.l.b16 %v72
    %v98 = vunpack.c.l.b16 %v73
    %v99 = vunpack.c.l.b16 %v74
    %v100 = vunpack.c.l.b16 %v75
    %v101 = vunpack.c.l.b16 %v76
    %v102 = vunpack.c.l.b16 %v77
    %v103 = vunpack.c.l.b16 %v78
    %v104 = vpack.c.b16 %v97, %v96
    %v105 = vpack.c.b16 %v99, %v98
    %v106 = vpack.c.b16 %v101, %v100
    %v107 = vpack.c.b16 %v103, %v102
    %vm112 = vcmask 523264
    %v114 = vsel %vm112, %v87, 0
    %116 = vmatpush.bf16.msra.mxu0 0
    %117 = vmatpush.bf16.msra.mxu0 0
    %118 = vmatpush.bf16.msra.mxu0 0
    %119 = vmatpush.bf16.msra.mxu0 0
    %120 = vmatpush.bf16.msra.mxu0 %v107
    %121 = vmatpush.bf16.msra.mxu0 %v106
    %122 = vmatpush.bf16.msra.mxu0 %v105
    %123 = vmatpush.bf16.msra.mxu0 %v104
    %124 = vmatmul.bf16.gmra.mxu0 %v114
    %v125 = vpop.f32.mrf.mxu0
    %v126 = vadd.f32 %v81, %v125
    %v127 = vpop.f32.mrf.mxu0
    %v128 = vadd.f32 %v81, %v127
    %129 = vdwg.mxu0
    %v130 = vmax.f32 %v126, 0.0
    %v131 = vmax.f32 %v128, 0.0
    %v132 = vpack.c.bf16 %v131, %v130
    %v133 = vld [vmem:[#allocation7] sm:$0xf]
    %v134 = vld [vmem:[#allocation7 + $0x4] sm:$0xf]
    %v135 = vld [vmem:[#allocation7 + $0x8] sm:$0xf]
    %v136 = vld [vmem:[#allocation7 + $0xc] sm:$0xf]
    %v137 = vld [vmem:[#allocation7 + $0x10] sm:$0xf]
    %v138 = vld [vmem:[#allocation7 + $0x14] sm:$0xf]
    %v139 = vld [vmem:[#allocation7 + $0x18] sm:$0xf]
    %v140 = vld [vmem:[#allocation7 + $0x1c] sm:$0xf]
    %v141 = vld [vmem:[#allocation7 + $0x20] sm:$0xf]
    %v142 = vld [vmem:[#allocation7 + $0x24] sm:$0xf]
    %v143 = vld [vmem:[#allocation7 + $0x28] sm:$0xf]
    %v144 = vld [vmem:[#allocation7 + $0x2c] sm:$0xf]
    %v145 = vld [vmem:[#allocation7 + $0x30] sm:$0xf]
    %v146 = vld [vmem:[#allocation7 + $0x34] sm:$0xf]
    %v147 = vld [vmem:[#allocation7 + $0x38] sm:$0xf]
    %v148 = vld [vmem:[#allocation7 + $0x3c] sm:$0xf]
    %v149 = vld [vmem:[%s4] sm:$0x1]
    %v151 = vperm.slane %v149, 0
    %v169 = vunpack.c.l.b16 %v133
    %v170 = vunpack.c.l.b16 %v134
    %v171 = vunpack.c.l.b16 %v135
    %v172 = vunpack.c.l.b16 %v136
    %v173 = vunpack.c.l.b16 %v137
    %v174 = vunpack.c.l.b16 %v138
    %v175 = vunpack.c.l.b16 %v139
    %v176 = vunpack.c.l.b16 %v140
    %v177 = vunpack.c.l.b16 %v141
    %v178 = vunpack.c.l.b16 %v142
    %v179 = vunpack.c.l.b16 %v143
    %v180 = vunpack.c.l.b16 %v144
    %v181 = vunpack.c.l.b16 %v145
    %v182 = vunpack.c.l.b16 %v146
    %v183 = vunpack.c.l.b16 %v147
    %v184 = vunpack.c.l.b16 %v148
    %v185 = vpack.c.b16 %v170, %v169
    %v186 = vpack.c.b16 %v172, %v171
    %v187 = vpack.c.b16 %v174, %v173
    %v188 = vpack.c.b16 %v176, %v175
    %v189 = vpack.c.b16 %v178, %v177
    %v190 = vpack.c.b16 %v180, %v179
    %v191 = vpack.c.b16 %v182, %v181
    %v192 = vpack.c.b16 %v184, %v183
    %201 = vmatpush.bf16.msra.mxu0 %v192
    %202 = vmatpush.bf16.msra.mxu0 %v191
    %203 = vmatpush.bf16.msra.mxu0 %v190
    %204 = vmatpush.bf16.msra.mxu0 %v189
    %205 = vmatpush.bf16.msra.mxu0 %v188
    %206 = vmatpush.bf16.msra.mxu0 %v187
    %207 = vmatpush.bf16.msra.mxu0 %v186
    %208 = vmatpush.bf16.msra.mxu0 %v185
    %209 = vmatmul.bf16.gmra.mxu0 %v132
    %v210 = vpop.f32.mrf.mxu0
    %v211 = vadd.f32 %v151, %v210
    %v212 = vpop.f32.mrf.mxu0
    %v213 = vadd.f32 %v151, %v212
    %214 = vdwg.mxu0
    %215 = vst [vmem:[#allocation8] sm:$0xff] %v211
    %216 = vst [vmem:[#allocation8 + $0x8] sm:$0xff] %v213
    // Predicated region
    $region34: #{tpu_custom_call.1} parent=1 // pred_check
      _
    $region35: #{tpu_custom_call.1} parent=1 // pred_check_branch
      %218 = sbr.rel (0) target = $region37
    $region36: #{tpu_custom_call.1} parent=1 // pred_region
      %220 = vsyncadd [#allocation4], 0
      %s221 = sshll.u32 [#allocation8], 4
      %s222 = int_to_ptr.vmem [resolvable:$true] %s221
      %s223 = sshll.u32 %s5, 4
      %s224 = int_to_ptr.hbm [resolvable:$true] %s223
      %229 = dma.vmem_to_hbm [thread:$0]  %s222, 256, %s224, [#allocation4], 128, 128, 8
    $region37: #{tpu_custom_call.1} parent=1 // pred_fallthru
      _
    // Predicated region
    $region38: #{tpu_custom_call.1} parent=1 // pred_check
      _
    $region39: #{tpu_custom_call.1} parent=1 // pred_check_branch
      %231 = sbr.rel (0) target = $region41
    $region40: #{tpu_custom_call.1} parent=1 // pred_region
      %233 = dma.done [#allocation4], 256
    $region41: #{tpu_custom_call.1} parent=1 // pred_fallthru
      _
    %234 = vsyncpa [#allocation3], 1
    %235 = vsyncpa [#allocation6], 1
    %236 = vsyncpa [#allocation4], 1

</llo_original>
